<compile_context>
chip_gen: v6e
topology: v6e:2x2x1
jax: 0.10.0
libtpu: 0.0.40
codegen_flags: <defaults>
</compile_context>

<pallas_src>
import numpy as np
import jax
import jax.numpy as jnp
from jax.experimental import pallas as pl
from jax.experimental.pallas import tpu as pltpu

# ---- model dimensions (small, consistent with the module's forward) --------------
B = 2            # batch
V = 32           # vocab_len
S = 8            # seq_len
D = 32           # dim
HD = 8           # attention_head_dim
H = D // HD      # num heads
FF = 4 * D       # GEGLU inner dim
M = B * S        # flattened token rows
HBS = H * M      # expanded attention columns (head-major, then batch, then key pos)


def _align(n, a):
    return ((n + a - 1) // a) * a


# ---- packed bf16 weight slab: [wqkv | wo | wff1 | emb], 128-aligned col offsets ---
WD_ROWS = _align(max(V, D), 8)
QKV_OFF = 0
WO_OFF = _align(3 * D, 128)
FF1_OFF = WO_OFF + _align(D, 128)
EMB_OFF = FF1_OFF + _align(2 * FF, 128)
WD_COLS = EMB_OFF + D

# ---- packed f32 constant slab: 8-aligned row offsets ------------------------------
POS_ROW = 0                          # (M, D)    positional encoding tiled over batch
BQKV_ROW = _align(M, 8)              # (1, 3D)   fused qkv bias (LN bias + scale folded)
BO_ROW = BQKV_ROW + 8                # (1, D)    attention output-projection bias
BFF1_ROW = BO_ROW + 8                # (1, 2FF)  GEGLU projection bias (LN bias folded)
BFF2_ROW = BFF1_ROW + 8              # (1, D)    FF output bias
HM_ROW = BFF2_ROW + 8                # (HBS, D)  head block mask / softmax-denominator matrix
ADDB_ROW = HM_ROW + _align(HBS, 8)   # (M, HBS)  cross-batch additive mask (0 / -1e9)
CONST_ROWS = ADDB_ROW + _align(M, 8)
CONST_COLS = max(2 * FF, 128)


# ---- positional encoding table (deterministic buffer, computed as glue) ----------
def make_pos_encoding(seq_len, seq, dim):
    # PositionalEncodingPermute1D(seq_len): (B, seq, dim) -> permute -> (B, dim, seq);
    # PositionalEncoding1D(channels=seq_len) treats "x"=dim, orig_ch=seq; permute back.
    channels = int(np.ceil(seq_len / 2) * 2)
    inv_freq = 1.0 / (10000.0 ** (np.arange(0, channels, 2, dtype=np.float32) / channels))
    pos_x = np.arange(dim, dtype=np.float32)
    sin_inp = np.einsum("i,j->ij", pos_x, inv_freq)               # (dim, channels//2)
    emb = np.stack((np.sin(sin_inp), np.cos(sin_inp)), axis=-1)   # interleave sin/cos
    emb = emb.reshape(dim, channels)
    penc = emb[:, :seq]                                           # keep orig_ch = seq
    return jnp.asarray(penc.T, dtype=jnp.float32)                 # (seq, dim)


# ---- the Pallas kernel -------------------------------------------------------------
def _text_encoder_kernel(ids_ref, mask_ref, wd_ref, wff2_ref, const_ref, out_ref):
    f32, bf16 = jnp.float32, jnp.bfloat16

    def normalize(x):  # LayerNorm; gain/bias are folded into the downstream weights
        mu = jnp.mean(x, axis=-1, keepdims=True)
        xc = x - mu
        var = jnp.mean(xc * xc, axis=-1, keepdims=True)
        return xc * jax.lax.rsqrt(var + 1e-5)

    # --- small params / compile-time constants from the single packed slab ---------
    pos = const_ref[POS_ROW:POS_ROW + M, 0:D]                       # (M, D)
    bqkv = const_ref[BQKV_ROW:BQKV_ROW + 1, 0:3 * D]                # (1, 3D)
    bo = const_ref[BO_ROW:BO_ROW + 1, 0:D]                          # (1, D)
    bff1 = const_ref[BFF1_ROW:BFF1_ROW + 1, 0:2 * FF]               # (1, 2FF)
    bff2 = const_ref[BFF2_ROW:BFF2_ROW + 1, 0:D]                    # (1, D)
    hm = const_ref[HM_ROW:HM_ROW + HBS, 0:D]                        # (HBS, D) 0/1 head mask
    addb = const_ref[ADDB_ROW:ADDB_ROW + M, 0:HBS]                  # (M, HBS) 0 / -1e9

    # --- word embedding (2D one-hot @ table on the MXU) + positional encoding ------
    ids = ids_ref[...]                                              # (M, 1) int32
    onehot = (ids == jax.lax.broadcasted_iota(jnp.int32, (M, V), 1)).astype(f32)
    emb_w = wd_ref[0:V, EMB_OFF:EMB_OFF + D]                        # (V, D) bf16
    h = jnp.dot(onehot.astype(bf16), emb_w, preferred_element_type=f32) + pos  # (M, D)

    # --- key-padding bias, tiled head-major across the expanded column axis --------
    kbias = (1.0 - mask_ref[...]) * (-10000.0)                      # (1, M)
    kbias_cols = jnp.concatenate([kbias] * H, axis=1)               # (1, HBS)

    # --- pre-LN self-attention: all batches & heads in three matmuls ---------------
    hn = normalize(h).astype(bf16)
    wqkv = wd_ref[0:D, QKV_OFF:QKV_OFF + 3 * D]                     # (D, 3D) bf16
    qkv = jnp.dot(hn, wqkv, preferred_element_type=f32) + bqkv      # (M, 3D) f32
    q, k, v = qkv[:, 0:D], qkv[:, D:2 * D], qkv[:, 2 * D:3 * D]

    # Block-diagonal expansion: row (h*M + r) of k_exp / v_exp is k/v row r restricted
    # to head h's feature slice, so scores and context for every (batch, head) come
    # from single wide matmuls instead of B*H tiny (8,8) ones.
    k_exp = (jnp.concatenate([k] * H, axis=0) * hm).astype(bf16)    # (HBS, D)
    v_exp = (jnp.concatenate([v] * H, axis=0) * hm).astype(bf16)    # (HBS, D)

    scores = jax.lax.dot_general(q.astype(bf16), k_exp,
                                 (((1,), (1,)), ((), ())),
                                 preferred_element_type=f32)        # (M, HBS)
    s = scores + addb + kbias_cols      # cross-batch blocks -> -1e9, masked keys -> -1e4
    m = jnp.max(s, axis=-1, keepdims=True)                          # shared row max (safe)
    p = jnp.exp(s - m)                                              # invalid cols -> exactly 0
    pb = p.astype(bf16)

    # per-(row, head) softmax denominators broadcast onto that head's feature columns
    denom = jnp.dot(pb, hm.astype(bf16), preferred_element_type=f32)  # (M, D)
    ctx = jnp.dot(pb, v_exp, preferred_element_type=f32)              # (M, D) unnormalized
    ctx = ctx * pl.reciprocal(jnp.maximum(denom, 1e-20), approx=True)

    wo = wd_ref[0:D, WO_OFF:WO_OFF + D]                             # (D, D) bf16
    h = h + jnp.dot(ctx.astype(bf16), wo, preferred_element_type=f32) + bo

    # --- pre-LN GEGLU feed-forward ---------------------------------------------------
    hn = normalize(h).astype(bf16)
    wff1 = wd_ref[0:D, FF1_OFF:FF1_OFF + 2 * FF]                    # (D, 2FF) bf16
    proj = jnp.dot(hn, wff1, preferred_element_type=f32) + bff1     # (M, 2FF)
    xp, gate = proj[:, 0:FF], proj[:, FF:2 * FF]                    # 128-aligned lane slices
    # TODO(synk): diffusers GEGLU uses exact (erf) GELU; tanh approximation kept for robust TPU lowering.
    ff = (xp * jax.nn.gelu(gate, approximate=True)).astype(bf16)
    h = h + jnp.dot(ff, wff2_ref[...], preferred_element_type=f32) + bff2

    out_ref[...] = h                        # flat (M, D) slab; wrapper reshapes to (B, S, D)


# ---- host-side folding + packing ---------------------------------------------------
def pack_params(params):
    f32 = jnp.float32
    g1 = params["ln1_g"].reshape(D); b1 = params["ln1_b"].reshape(D)
    g3 = params["ln3_g"].reshape(D); b3 = params["ln3_b"].reshape(D)
    scale = 1.0 / float(HD) ** 0.5

    # fold LN gain/bias (and the attention score scale) into the downstream weights
    wq = g1[:, None] * params["wq"] * scale
    wk = g1[:, None] * params["wk"]
    wv = g1[:, None] * params["wv"]
    bq = (b1 @ params["wq"]) * scale
    bk = b1 @ params["wk"]
    bv = b1 @ params["wv"]
    wqkv = jnp.concatenate([wq, wk, wv], axis=1)                    # (D, 3D)
    bqkv = jnp.concatenate([bq, bk, bv]).reshape(1, 3 * D)
    wff1 = g3[:, None] * params["wff1"]                             # (D, 2FF)
    bff1 = params["bff1"] + (b3 @ params["wff1"]).reshape(1, 2 * FF)

    def place(slab, a, r, c):
        return slab.at[r:r + a.shape[0], c:c + a.shape[1]].set(a)

    # bf16 weight slab
    wd = jnp.zeros((WD_ROWS, WD_COLS), f32)
    wd = place(wd, wqkv, 0, QKV_OFF)
    wd = place(wd, params["wo"], 0, WO_OFF)
    wd = place(wd, wff1, 0, FF1_OFF)
    wd = place(wd, params["emb"], 0, EMB_OFF)
    wd = wd.astype(jnp.bfloat16)
    wff2 = params["wff2"].astype(jnp.bfloat16)                      # (FF, D)

    # f32 constant slab: pos (tiled to (M, D)), biases, head mask, cross-batch mask
    pos_bsd = jnp.tile(make_pos_encoding(S, S, D), (B, 1))          # (M, D)
    row_c = np.arange(HBS)[:, None]
    hm = (row_c // M == np.arange(D)[None, :] // HD).astype(np.float32)     # (HBS, D)
    r = np.arange(M)[:, None]; c = np.arange(HBS)[None, :]
    addb = np.where(r // S == (c % M) // S, 0.0, -1e9).astype(np.float32)   # (M, HBS)

    cst = jnp.zeros((CONST_ROWS, CONST_COLS), f32)
    cst = place(cst, pos_bsd, POS_ROW, 0)
    cst = place(cst, bqkv, BQKV_ROW, 0)
    cst = place(cst, params["bo"], BO_ROW, 0)
    cst = place(cst, bff1, BFF1_ROW, 0)
    cst = place(cst, params["bff2"], BFF2_ROW, 0)
    cst = place(cst, jnp.asarray(hm), HM_ROW, 0)
    cst = place(cst, jnp.asarray(addb), ADDB_ROW, 0)
    return wd, wff2, cst


# ---- wrapper -----------------------------------------------------------------------
def text_encoder_forward(input_ids, attention_mask, packed):
    wd, wff2, consts = packed
    ids2 = input_ids.reshape(M, 1).astype(jnp.int32)
    mask2 = attention_mask.reshape(1, M).astype(jnp.float32)
    vmem = pl.BlockSpec(memory_space=pltpu.MemorySpace.VMEM)
    out = pl.pallas_call(
        _text_encoder_kernel,
        out_shape=jax.ShapeDtypeStruct((M, D), jnp.float32),
        in_specs=[vmem] * 5,
        out_specs=vmem,
    )(ids2, mask2, wd, wff2, consts)
    return out.reshape(B, S, D)


def init_params(key):
    ks = jax.random.split(key, 6)
    std = 0.02
    f32 = jnp.float32
    return {
        "emb":   jax.random.normal(ks[0], (V, D), f32) * std,
        "ln1_g": jnp.ones((1, D), f32),
        "ln1_b": jnp.zeros((1, D), f32),
        "wq":    jax.random.normal(ks[1], (D, D), f32) * std,
        "wk":    jax.random.normal(ks[2], (D, D), f32) * std,
        "wv":    jax.random.normal(ks[3], (D, D), f32) * std,
        "wo":    jax.random.normal(ks[4], (D, D), f32) * std,
        "bo":    jnp.zeros((1, D), f32),
        "ln3_g": jnp.ones((1, D), f32),
        "ln3_b": jnp.zeros((1, D), f32),
        "wff1":  jax.random.normal(ks[5], (D, 2 * FF), f32) * std,
        "bff1":  jnp.zeros((1, 2 * FF), f32),
        "wff2":  jax.random.normal(jax.random.fold_in(key, 99), (FF, D), f32) * std,
        "bff2":  jnp.zeros((1, D), f32),
    }


if __name__ == "__main__":
    key = jax.random.PRNGKey(0)
    pkey, ikey = jax.random.split(key)
    params = init_params(pkey)
    packed = pack_params(params)

    input_ids = jax.random.randint(ikey, (B, S), 0, V, dtype=jnp.int32)
    attention_mask = jnp.ones((B, S), jnp.float32).at[1, 6:].set(0.0)

    out = text_encoder_forward(input_ids, attention_mask, packed)
    jax.block_until_ready(out)
    assert out.shape == (B, S, D) and out.dtype == jnp.float32
    assert bool(jnp.all(jnp.isfinite(out)))
    print("KERNEL_OK")
</pallas_src>

<mosaic_0001>
module attributes {stable_mosaic.version = 11 : i64} {
  func.func @_text_encoder_kernel(%arg0: memref<16x1xi32, #tpu.memory_space<vmem>>, %arg1: memref<1x16xf32, #tpu.memory_space<vmem>>, %arg2: memref<32x544xbf16, #tpu.memory_space<vmem>>, %arg3: memref<128x32xbf16, #tpu.memory_space<vmem>>, %arg4: memref<128x256xf32, #tpu.memory_space<vmem>>, %arg5: memref<16x32xf32, #tpu.memory_space<vmem>>) attributes {dimension_semantics = [], scalar_prefetch = 0 : i64, scratch_operands = 0 : i64, tpu.core_type = #tpu.core_type<tc>} {
    %c0 = arith.constant 0 : index
    %c0_0 = arith.constant 0 : index
    %0 = vector.load %arg4[%c0, %c0_0] : memref<128x256xf32, #tpu.memory_space<vmem>>, vector<16x32xf32>
    %c16 = arith.constant 16 : index
    %c0_1 = arith.constant 0 : index
    %1 = vector.load %arg4[%c16, %c0_1] : memref<128x256xf32, #tpu.memory_space<vmem>>, vector<1x96xf32>
    %c24 = arith.constant 24 : index
    %c0_2 = arith.constant 0 : index
    %2 = vector.load %arg4[%c24, %c0_2] : memref<128x256xf32, #tpu.memory_space<vmem>>, vector<1x32xf32>
    %c32 = arith.constant 32 : index
    %c0_3 = arith.constant 0 : index
    %3 = vector.load %arg4[%c32, %c0_3] : memref<128x256xf32, #tpu.memory_space<vmem>>, vector<1x256xf32>
    %c40 = arith.constant 40 : index
    %c0_4 = arith.constant 0 : index
    %4 = vector.load %arg4[%c40, %c0_4] : memref<128x256xf32, #tpu.memory_space<vmem>>, vector<1x32xf32>
    %c48 = arith.constant 48 : index
    %c0_5 = arith.constant 0 : index
    %5 = vector.load %arg4[%c48, %c0_5] : memref<128x256xf32, #tpu.memory_space<vmem>>, vector<64x32xf32>
    %c112 = arith.constant 112 : index
    %c0_6 = arith.constant 0 : index
    %6 = vector.load %arg4[%c112, %c0_6] : memref<128x256xf32, #tpu.memory_space<vmem>>, vector<16x64xf32>
    %c0_7 = arith.constant 0 : index
    %c0_8 = arith.constant 0 : index
    %7 = vector.load %arg0[%c0_7, %c0_8] : memref<16x1xi32, #tpu.memory_space<vmem>>, vector<16x1xi32>
    %8 = tpu.iota {dimensions = array<i32: 1>} : vector<16x32xi32>
    %9 = vector.broadcast %7 : vector<16x1xi32> to vector<16x32xi32>
    %10 = arith.cmpi eq, %9, %8 : vector<16x32xi32>
    %11 = arith.extui %10 : vector<16x32xi1> to vector<16x32xi32>
    %12 = arith.sitofp %11 : vector<16x32xi32> to vector<16x32xf32>
    %c0_9 = arith.constant 0 : index
    %c512 = arith.constant 512 : index
    %13 = vector.load %arg2[%c0_9, %c512] : memref<32x544xbf16, #tpu.memory_space<vmem>>, vector<32x32xbf16>
    %14 = arith.truncf %12 : vector<16x32xf32> to vector<16x32xbf16>
    %cst = arith.constant dense<0.000000e+00> : vector<16x32xf32>
    %15 = tpu.matmul %14, %13, %cst {dimension_numbers = #tpu.dot_dimension_numbers<[1], [0], [0], [1], [0, 0, 1, 1], [], []>} : vector<16x32xbf16>, vector<32x32xbf16>, vector<16x32xf32> -> vector<16x32xf32>
    %16 = arith.addf %15, %0 : vector<16x32xf32>
    %c0_10 = arith.constant 0 : index
    %c0_11 = arith.constant 0 : index
    %17 = vector.load %arg1[%c0_10, %c0_11] : memref<1x16xf32, #tpu.memory_space<vmem>>, vector<1x16xf32>
    %cst_12 = arith.constant 1.000000e+00 : f32
    %18 = vector.broadcast %cst_12 : f32 to vector<1x16xf32>
    %19 = arith.subf %18, %17 : vector<1x16xf32>
    %cst_13 = arith.constant -1.000000e+04 : f32
    %20 = vector.broadcast %cst_13 : f32 to vector<1x16xf32>
    %21 = arith.mulf %19, %20 : vector<1x16xf32>
    %22 = tpu.concatenate %21, %21, %21, %21 in 1 : vector<1x16xf32>, vector<1x16xf32>, vector<1x16xf32>, vector<1x16xf32> -> vector<1x64xf32>
    %cst_14 = arith.constant dense<0.000000e+00> : vector<16xf32>
    %23 = vector.multi_reduction <add>, %16, %cst_14 [1] : vector<16x32xf32> to vector<16xf32>
    %24 = vector.shape_cast %23 : vector<16xf32> to vector<16x1xf32>
    %cst_15 = arith.constant 3.200000e+01 : f32
    %25 = vector.broadcast %cst_15 : f32 to vector<16x1xf32>
    %26 = arith.divf %24, %25 : vector<16x1xf32>
    %27 = vector.broadcast %26 : vector<16x1xf32> to vector<16x32xf32>
    %28 = arith.subf %16, %27 : vector<16x32xf32>
    %29 = arith.mulf %28, %28 : vector<16x32xf32>
    %cst_16 = arith.constant dense<0.000000e+00> : vector<16xf32>
    %30 = vector.multi_reduction <add>, %29, %cst_16 [1] : vector<16x32xf32> to vector<16xf32>
    %31 = vector.shape_cast %30 : vector<16xf32> to vector<16x1xf32>
    %cst_17 = arith.constant 3.200000e+01 : f32
    %32 = vector.broadcast %cst_17 : f32 to vector<16x1xf32>
    %33 = arith.divf %31, %32 : vector<16x1xf32>
    %cst_18 = arith.constant 9.99999974E-6 : f32
    %34 = vector.broadcast %cst_18 : f32 to vector<16x1xf32>
    %35 = arith.addf %33, %34 : vector<16x1xf32>
    %36 = math.rsqrt %35 : vector<16x1xf32>
    %37 = vector.broadcast %36 : vector<16x1xf32> to vector<16x32xf32>
    %38 = arith.mulf %28, %37 : vector<16x32xf32>
    %39 = arith.truncf %38 : vector<16x32xf32> to vector<16x32xbf16>
    %c0_19 = arith.constant 0 : index
    %c0_20 = arith.constant 0 : index
    %40 = vector.load %arg2[%c0_19, %c0_20] : memref<32x544xbf16, #tpu.memory_space<vmem>>, vector<32x96xbf16>
    %cst_21 = arith.constant dense<0.000000e+00> : vector<16x96xf32>
    %41 = tpu.matmul %39, %40, %cst_21 {dimension_numbers = #tpu.dot_dimension_numbers<[1], [0], [0], [1], [0, 0, 1, 1], [], []>} : vector<16x32xbf16>, vector<32x96xbf16>, vector<16x96xf32> -> vector<16x96xf32>
    %42 = vector.broadcast %1 : vector<1x96xf32> to vector<16x96xf32>
    %43 = arith.addf %41, %42 : vector<16x96xf32>
    %44 = vector.extract_strided_slice %43 {offsets = [0, 0], sizes = [16, 32], strides = [1, 1]} : vector<16x96xf32> to vector<16x32xf32>
    %45 = vector.extract_strided_slice %43 {offsets = [0, 32], sizes = [16, 32], strides = [1, 1]} : vector<16x96xf32> to vector<16x32xf32>
    %46 = vector.extract_strided_slice %43 {offsets = [0, 64], sizes = [16, 32], strides = [1, 1]} : vector<16x96xf32> to vector<16x32xf32>
    %47 = tpu.concatenate %45, %45, %45, %45 in 0 : vector<16x32xf32>, vector<16x32xf32>, vector<16x32xf32>, vector<16x32xf32> -> vector<64x32xf32>
    %48 = arith.mulf %47, %5 : vector<64x32xf32>
    %49 = arith.truncf %48 : vector<64x32xf32> to vector<64x32xbf16>
    %50 = tpu.concatenate %46, %46, %46, %46 in 0 : vector<16x32xf32>, vector<16x32xf32>, vector<16x32xf32>, vector<16x32xf32> -> vector<64x32xf32>
    %51 = arith.mulf %50, %5 : vector<64x32xf32>
    %52 = arith.truncf %51 : vector<64x32xf32> to vector<64x32xbf16>
    %53 = arith.truncf %44 : vector<16x32xf32> to vector<16x32xbf16>
    %cst_22 = arith.constant dense<0.000000e+00> : vector<16x64xf32>
    %54 = tpu.matmul %53, %49, %cst_22 {dimension_numbers = #tpu.dot_dimension_numbers<[1], [1], [0], [0], [0, 0, 1, 0], [], []>} : vector<16x32xbf16>, vector<64x32xbf16>, vector<16x64xf32> -> vector<16x64xf32>
    %55 = arith.addf %54, %6 : vector<16x64xf32>
    %56 = vector.broadcast %22 : vector<1x64xf32> to vector<16x64xf32>
    %57 = arith.addf %55, %56 : vector<16x64xf32>
    %cst_23 = arith.constant dense<0xFF800000> : vector<16xf32>
    %58 = vector.multi_reduction <maximumf>, %57, %cst_23 [1] : vector<16x64xf32> to vector<16xf32>
    %59 = vector.shape_cast %58 : vector<16xf32> to vector<16x1xf32>
    %60 = vector.broadcast %59 : vector<16x1xf32> to vector<16x64xf32>
    %61 = arith.subf %57, %60 : vector<16x64xf32>
    %62 = math.exp %61 : vector<16x64xf32>
    %63 = arith.truncf %62 : vector<16x64xf32> to vector<16x64xbf16>
    %64 = arith.truncf %5 : vector<64x32xf32> to vector<64x32xbf16>
    %cst_24 = arith.constant dense<0.000000e+00> : vector<16x32xf32>
    %65 = tpu.matmul %63, %64, %cst_24 {dimension_numbers = #tpu.dot_dimension_numbers<[1], [0], [0], [1], [0, 0, 1, 1], [], []>} : vector<16x64xbf16>, vector<64x32xbf16>, vector<16x32xf32> -> vector<16x32xf32>
    %cst_25 = arith.constant dense<0.000000e+00> : vector<16x32xf32>
    %66 = tpu.matmul %63, %52, %cst_25 {dimension_numbers = #tpu.dot_dimension_numbers<[1], [0], [0], [1], [0, 0, 1, 1], [], []>} : vector<16x64xbf16>, vector<64x32xbf16>, vector<16x32xf32> -> vector<16x32xf32>
    %cst_26 = arith.constant 9.99999968E-21 : f32
    %67 = vector.broadcast %cst_26 : f32 to vector<16x32xf32>
    %68 = arith.maximumf %65, %67 : vector<16x32xf32>
    %69 = tpu.reciprocal %68 {approx = true} : vector<16x32xf32> -> vector<16x32xf32>
    %70 = arith.mulf %66, %69 : vector<16x32xf32>
    %c0_27 = arith.constant 0 : index
    %c128 = arith.constant 128 : index
    %71 = vector.load %arg2[%c0_27, %c128] : memref<32x544xbf16, #tpu.memory_space<vmem>>, vector<32x32xbf16>
    %72 = arith.truncf %70 : vector<16x32xf32> to vector<16x32xbf16>
    %cst_28 = arith.constant dense<0.000000e+00> : vector<16x32xf32>
    %73 = tpu.matmul %72, %71, %cst_28 {dimension_numbers = #tpu.dot_dimension_numbers<[1], [0], [0], [1], [0, 0, 1, 1], [], []>} : vector<16x32xbf16>, vector<32x32xbf16>, vector<16x32xf32> -> vector<16x32xf32>
    %74 = arith.addf %16, %73 : vector<16x32xf32>
    %75 = vector.broadcast %2 : vector<1x32xf32> to vector<16x32xf32>
    %76 = arith.addf %74, %75 : vector<16x32xf32>
    %cst_29 = arith.constant dense<0.000000e+00> : vector<16xf32>
    %77 = vector.multi_reduction <add>, %76, %cst_29 [1] : vector<16x32xf32> to vector<16xf32>
    %78 = vector.shape_cast %77 : vector<16xf32> to vector<16x1xf32>
    %cst_30 = arith.constant 3.200000e+01 : f32
    %79 = vector.broadcast %cst_30 : f32 to vector<16x1xf32>
    %80 = arith.divf %78, %79 : vector<16x1xf32>
    %81 = vector.broadcast %80 : vector<16x1xf32> to vector<16x32xf32>
    %82 = arith.subf %76, %81 : vector<16x32xf32>
    %83 = arith.mulf %82, %82 : vector<16x32xf32>
    %cst_31 = arith.constant dense<0.000000e+00> : vector<16xf32>
    %84 = vector.multi_reduction <add>, %83, %cst_31 [1] : vector<16x32xf32> to vector<16xf32>
    %85 = vector.shape_cast %84 : vector<16xf32> to vector<16x1xf32>
    %cst_32 = arith.constant 3.200000e+01 : f32
    %86 = vector.broadcast %cst_32 : f32 to vector<16x1xf32>
    %87 = arith.divf %85, %86 : vector<16x1xf32>
    %cst_33 = arith.constant 9.99999974E-6 : f32
    %88 = vector.broadcast %cst_33 : f32 to vector<16x1xf32>
    %89 = arith.addf %87, %88 : vector<16x1xf32>
    %90 = math.rsqrt %89 : vector<16x1xf32>
    %91 = vector.broadcast %90 : vector<16x1xf32> to vector<16x32xf32>
    %92 = arith.mulf %82, %91 : vector<16x32xf32>
    %93 = arith.truncf %92 : vector<16x32xf32> to vector<16x32xbf16>
    %c0_34 = arith.constant 0 : index
    %c256 = arith.constant 256 : index
    %94 = vector.load %arg2[%c0_34, %c256] : memref<32x544xbf16, #tpu.memory_space<vmem>>, vector<32x256xbf16>
    %cst_35 = arith.constant dense<0.000000e+00> : vector<16x256xf32>
    %95 = tpu.matmul %93, %94, %cst_35 {dimension_numbers = #tpu.dot_dimension_numbers<[1], [0], [0], [1], [0, 0, 1, 1], [], []>} : vector<16x32xbf16>, vector<32x256xbf16>, vector<16x256xf32> -> vector<16x256xf32>
    %96 = vector.broadcast %3 : vector<1x256xf32> to vector<16x256xf32>
    %97 = arith.addf %95, %96 : vector<16x256xf32>
    %98 = vector.extract_strided_slice %97 {offsets = [0, 0], sizes = [16, 128], strides = [1, 1]} : vector<16x256xf32> to vector<16x128xf32>
    %99 = vector.extract_strided_slice %97 {offsets = [0, 128], sizes = [16, 128], strides = [1, 1]} : vector<16x256xf32> to vector<16x128xf32>
    %100 = arith.mulf %99, %99 : vector<16x128xf32>
    %101 = arith.mulf %99, %100 : vector<16x128xf32>
    %cst_36 = arith.constant 4.471500e-02 : f32
    %102 = vector.broadcast %cst_36 : f32 to vector<16x128xf32>
    %103 = arith.mulf %102, %101 : vector<16x128xf32>
    %104 = arith.addf %99, %103 : vector<16x128xf32>
    %cst_37 = arith.constant 0.797884583 : f32
    %105 = vector.broadcast %cst_37 : f32 to vector<16x128xf32>
    %106 = arith.mulf %105, %104 : vector<16x128xf32>
    %107 = math.tanh %106 : vector<16x128xf32>
    %cst_38 = arith.constant 1.000000e+00 : f32
    %108 = vector.broadcast %cst_38 : f32 to vector<16x128xf32>
    %109 = arith.addf %108, %107 : vector<16x128xf32>
    %cst_39 = arith.constant 5.000000e-01 : f32
    %110 = vector.broadcast %cst_39 : f32 to vector<16x128xf32>
    %111 = arith.mulf %110, %109 : vector<16x128xf32>
    %112 = arith.mulf %99, %111 : vector<16x128xf32>
    %113 = arith.mulf %98, %112 : vector<16x128xf32>
    %114 = arith.truncf %113 : vector<16x128xf32> to vector<16x128xbf16>
    %c0_40 = arith.constant 0 : index
    %c0_41 = arith.constant 0 : index
    %115 = vector.load %arg3[%c0_40, %c0_41] : memref<128x32xbf16, #tpu.memory_space<vmem>>, vector<128x32xbf16>
    %cst_42 = arith.constant dense<0.000000e+00> : vector<16x32xf32>
    %116 = tpu.matmul %114, %115, %cst_42 {dimension_numbers = #tpu.dot_dimension_numbers<[1], [0], [0], [1], [0, 0, 1, 1], [], []>} : vector<16x128xbf16>, vector<128x32xbf16>, vector<16x32xf32> -> vector<16x32xf32>
    %117 = arith.addf %76, %116 : vector<16x32xf32>
    %118 = vector.broadcast %4 : vector<1x32xf32> to vector<16x32xf32>
    %119 = arith.addf %117, %118 : vector<16x32xf32>
    %c0_43 = arith.constant 0 : index
    %c0_44 = arith.constant 0 : index
    %120 = vector.load %arg5[%c0_43, %c0_44] : memref<16x32xf32, #tpu.memory_space<vmem>>, vector<16x32xf32>
    tpu.vector_store %arg5[%c0_43, %c0_44], %119 {strides = array<i32>} : memref<16x32xf32, #tpu.memory_space<vmem>>, vector<16x32xf32>,
    return
  }
}

</mosaic_0001>

<llo_original>
// kernel: tpu_custom_call.1
$region0: #{tpu_custom_call.1}
  #allocation0 [shape = 'u32[]', space=smem, size = 0x4, offset = 0x4, fixed_abs, tag = 'smem constant byte address 0x4 - core index']
  #allocation1 [shape = 'u32[144,128]{1,0:T(1,128)}', space=vmem, size = 0x12000, scoped, tag = 'internal scratch']
  %s0 = inlined_call_operand.vmem [shape: s32[16,1], index: 0, kind: input, shape index: {}]
  %s1 = inlined_call_operand.vmem [shape: f32[1,16], index: 1, kind: input, shape index: {}]
  %s2 = inlined_call_operand.vmem [shape: bf16[32,544], index: 2, kind: input, shape index: {}]
  %s3 = inlined_call_operand.vmem [shape: bf16[128,32], index: 3, kind: input, shape index: {}]
  %s4 = inlined_call_operand.hbm [shape: f32[128,256], index: 4, kind: input, shape index: {}]
  %s5 = inlined_call_operand.hbm [shape: f32[16,32], index: 5, kind: output, shape index: {}]
  %s6 = sld [smem:[#allocation0]]
  $region34: #{tpu_custom_call.1} parent=0
    _
  %s8 = ssub.s32 1, %s6
  %s9 = scalar_select 0, %s8, %s6
  $region1: #{tpu_custom_call.1} parent=0
    #allocation2 [shape = 'u8[131072]{0}', space=vmem, size = 0x20000, scoped, tag = 'input window, operand 4, single buffered']
    #allocation3 [shape = 's32[1]{0}', space=sflag, size = 0x4, scoped, tag = 'scoped memory for tpu_custom_call.1']
    #allocation4 [shape = 's32[1]{0}', space=sflag, size = 0x4, scoped, tag = 'scoped memory for tpu_custom_call.1']
    #allocation5 [shape = 'u8[8192]{0}', space=vmem, size = 0x2000, scoped, tag = 'output window, operand 0, single buffered']
    %10 = vsyncpa [#allocation3], 0
    %11 = vsyncpa [#allocation4], 0
    // Predicated region
    $region2: #{tpu_custom_call.1} parent=1 // pred_check
      _
    $region3: #{tpu_custom_call.1} parent=1 // pred_check_branch
      %13 = sbr.rel (0) target = $region5
    $region4: #{tpu_custom_call.1} parent=1 // pred_region
      _
    $region5: #{tpu_custom_call.1} parent=1 // pred_fallthru
      _
    // Predicated region
    $region6: #{tpu_custom_call.1} parent=1 // pred_check
      _
    $region7: #{tpu_custom_call.1} parent=1 // pred_check_branch
      %15 = sbr.rel (0) target = $region9
    $region8: #{tpu_custom_call.1} parent=1 // pred_region
      _
    $region9: #{tpu_custom_call.1} parent=1 // pred_fallthru
      _
    // Predicated region
    $region10: #{tpu_custom_call.1} parent=1 // pred_check
      _
    $region11: #{tpu_custom_call.1} parent=1 // pred_check_branch
      %17 = sbr.rel (0) target = $region13
    $region12: #{tpu_custom_call.1} parent=1 // pred_region
      _
    $region13: #{tpu_custom_call.1} parent=1 // pred_fallthru
      _
    // Predicated region
    $region14: #{tpu_custom_call.1} parent=1 // pred_check
      _
    $region15: #{tpu_custom_call.1} parent=1 // pred_check_branch
      %19 = sbr.rel (0) target = $region17
    $region16: #{tpu_custom_call.1} parent=1 // pred_region
      _
    $region17: #{tpu_custom_call.1} parent=1 // pred_fallthru
      _
    // Predicated region
    $region18: #{tpu_custom_call.1} parent=1 // pred_check
      _
    $region19: #{tpu_custom_call.1} parent=1 // pred_check_branch
      %21 = sbr.rel (0) target = $region21
    $region20: #{tpu_custom_call.1} parent=1 // pred_region
      %s23 = ssub.s32 4096, 4096
      %24 = vsyncadd [#allocation3], %s23
      %s25 = sshll.u32 [#allocation2], 4
      %s26 = int_to_ptr.vmem [resolvable:$true] %s25
      %31 = dma.hbm_to_vmem [thread:$0]  %s4, 4096, %s26, [#allocation3], 256, 256, 16
    $region21: #{tpu_custom_call.1} parent=1 // pred_fallthru
      _
    // Predicated region
    $region22: #{tpu_custom_call.1} parent=1 // pred_check
      _
    $region23: #{tpu_custom_call.1} parent=1 // pred_check_branch
      %33 = sbr.rel (0) target = $region25
    $region24: #{tpu_custom_call.1} parent=1 // pred_region
      %34 = dma.done [#allocation3], 4096
    $region25: #{tpu_custom_call.1} parent=1 // pred_fallthru
      _
    %v36 = vld [vmem:[#allocation2] sm:$0xff]
    %v37 = vld [vmem:[#allocation2 + $0x10] sm:$0xff]
    %v38 = vld [vmem:[#allocation2 + $0x20] ss:$0 sm:$0xff]
    %v39 = vld [vmem:[#allocation2 + $0x30] ss:$0 sm:$0xff]
    %s40 = scalar_lea.vmem [#allocation2], 64
    %v41 = vld [vmem:[%s40] ss:$8 sm:$0x3]
    %v42 = vld [vmem:[#allocation2 + $0x50] ss:$0 sm:$0xff]
    %v43 = vld [vmem:[#allocation2 + $0x60] sm:$0xff]
    %v44 = vld [vmem:[#allocation2 + $0x70] sm:$0xff]
    %v45 = vld [vmem:[#allocation2 + $0x80] sm:$0xff]
    %v46 = vld [vmem:[#allocation2 + $0x90] sm:$0xff]
    %v47 = vld [vmem:[#allocation2 + $0xa0] sm:$0xff]
    %v48 = vld [vmem:[#allocation2 + $0xb0] sm:$0xff]
    %v49 = vld [vmem:[#allocation2 + $0xc0] sm:$0xff]
    %v50 = vld [vmem:[#allocation2 + $0xd0] sm:$0xff]
    %v51 = vld [vmem:[#allocation2 + $0xe0] sm:$0xff]
    %v52 = vld [vmem:[#allocation2 + $0xf0] sm:$0xff]
    %v53 = vld [vmem:[%s0] sm:$0xff]
    %v54 = vld [vmem:[%s0 + $0x8] sm:$0xff]
    %v55 = vlaneseq
    %v56 = vand.u32 %v55, 127
    %57 = vset.pattern.permute.xlu0 0
    %58 = vperm.xlu0 %57, %v53
    %v59 = vpop.permute.xlu0 %58
    %60 = vset.pattern.permute.xlu0 0
    %61 = vperm.xlu0 %60, %v54
    %v62 = vpop.permute.xlu0 %61
    %vm63 = vcmp.eq.s32.totalorder %v59, %v56
    %vm64 = vcmp.eq.s32.totalorder %v62, %v56
    %v65 = vld [vmem:[%s2 + $0x10] sm:$0xf]
    %v66 = vld [vmem:[%s2 + $0x24] sm:$0xf]
    %v67 = vld [vmem:[%s2 + $0x38] sm:$0xf]
    %v68 = vld [vmem:[%s2 + $0x4c] sm:$0xf]
    %v69 = vsel %vm63, 1, 0
    %v70 = vsel %vm64, 1, 0
    %v71 = vcvt.s32.f32 %v69
    %v72 = vcvt.s32.f32 %v70
    %v73 = vpack.c.bf16 %v72, %v71
    %v78 = vunpack.c.l.b16 %v65
    %v79 = vunpack.c.l.b16 %v66
    %v80 = vunpack.c.l.b16 %v67
    %v81 = vunpack.c.l.b16 %v68
    %v82 = vpack.c.b16 %v79, %v78
    %v83 = vpack.c.b16 %v81, %v80
    %vm86 = vcmask 261120
    %v88 = vsel %vm86, %v73, 0
    %90 = vmatprep.subr.bf16.mxu0 0
    %91 = vmatpush1.bf16.msra.mxu0 0
    %92 = vmatprep.subr.bf16.mxu0 0
    %93 = vmatpush1.bf16.msra.mxu0 0
    %94 = vmatprep.subr.bf16.mxu0 0
    %95 = vmatpush1.bf16.msra.mxu0 0
    %96 = vmatprep.subr.bf16.mxu0 0
    %97 = vmatpush1.bf16.msra.mxu0 0
    %98 = vmatprep.subr.bf16.mxu0 0
    %99 = vmatpush1.bf16.msra.mxu0 0
    %100 = vmatprep.subr.bf16.mxu0 0
    %101 = vmatpush1.bf16.msra.mxu0 0
    %102 = vmatprep.subr.bf16.mxu0 0
    %103 = vmatpush1.bf16.msra.mxu0 %v83
    %104 = vmatprep.subr.bf16.mxu0 0
    %105 = vmatpush1.bf16.msra.mxu0 %v82
    %106 = vmatprep.subr.bf16.mxu0 0
    %107 = vmatpush2.bf16.msra.mxu0 0
    %108 = vmatprep.subr.bf16.mxu0 0
    %109 = vmatpush2.bf16.msra.mxu0 0
    %110 = vmatprep.subr.bf16.mxu0 0
    %111 = vmatpush2.bf16.msra.mxu0 0
    %112 = vmatprep.subr.bf16.mxu0 0
    %113 = vmatpush2.bf16.msra.mxu0 0
    %114 = vmatprep.subr.bf16.mxu0 0
    %115 = vmatpush2.bf16.msra.mxu0 0
    %116 = vmatprep.subr.bf16.mxu0 0
    %117 = vmatpush2.bf16.msra.mxu0 0
    %118 = vmatprep.subr.bf16.mxu0 0
    %119 = vmatpush2.bf16.msra.mxu0 0
    %120 = vmatprep.subr.bf16.mxu0 0
    %121 = vmatpush2.bf16.msra.mxu0 0
    %122 = vmatprep.mubr.bf16.mxu0 0
    %123 = vmatmul.mubr.bf16.gmra.mxu0 %v88
    %v124 = vpop.f32.mrf.mxu0
    %v125 = vadd.f32 %v36, %v124
    %v126 = vpop.f32.mrf.mxu0
    %v127 = vpop.f32.mrf.mxu0
    %v128 = vadd.f32 %v37, %v127
    %v129 = vpop.f32.mrf.mxu0
    %130 = vdwg.mxu0
    %v131 = vld [vmem:[%s1] sm:$0x1]
    %v132 = vsub.f32 1.0, %v131
    %v133 = vmul.f32 %v132, -10000.0
    %v135 = vlaneseq
    %v136 = vshrl.u32 %v135, 7
    %v137 = vsub.s32 0, %v136
    %v138 = vrot.slane %v133, %v137
    %139 = vrot.lane.b32.xlu0 %v138, 16
    %v140 = vpop.permute.xlu0 %139
    %142 = vrot.lane.b32.xlu0 %v138, 32
    %v143 = vpop.permute.xlu0 %142
    %145 = vrot.lane.b32.xlu0 %v138, 48
    %v146 = vpop.permute.xlu0 %145
    %vm148 = vcmask 130048
    %v149 = vsel %vm148, %v133, %v140
    %v150 = vsel %vm86, %v149, %v143
    %vm151 = vcmask 392192
    %v152 = vsel %vm151, %v150, %v146
    %v153 = vsel %vm86, %v125, 0.0
    %154 = vadd.xlane.f32.xlu0 %v153
    %v155 = vpop.xlane.xlu0 %154
    %v156 = vsel %vm86, %v128, 0.0
    %157 = vadd.xlane.f32.xlu0 %v156
    %v158 = vpop.xlane.xlu0 %157
    %v159 = vrcp.pop 32.0
    %v160 = vmul.f32 %v155, %v159
    %v161 = vmul.f32 %v158, %v159
    %v162 = vsub.f32 %v125, %v160
    %v163 = vsub.f32 %v128, %v161
    %v164 = vmul.f32 %v162, %v162
    %v165 = vmul.f32 %v163, %v163
    %v166 = vsel %vm86, %v164, 0.0
    %167 = vadd.xlane.f32.xlu0 %v166
    %v168 = vpop.xlane.xlu0 %167
    %v169 = vsel %vm86, %v165, 0.0
    %170 = vadd.xlane.f32.xlu0 %v169
    %v171 = vpop.xlane.xlu0 %170
    %v172 = vmul.f32 %v168, %v159
    %v173 = vmul.f32 %v171, %v159
    %v174 = vadd.f32 %v172, 1e-05
    %v175 = vadd.f32 %v173, 1e-05
    %v176 = vrsqrt.pop %v174
    %v177 = vrsqrt.pop %v175
    %v178 = vmul.f32 %v162, %v176
    %v179 = vmul.f32 %v163, %v177
    %v180 = vpack.c.bf16 %v179, %v178
    %v181 = vld [vmem:[%s2] sm:$0xf]
    %v182 = vld [vmem:[%s2 + $0x14] sm:$0xf]
    %v183 = vld [vmem:[%s2 + $0x28] sm:$0xf]
    %v184 = vld [vmem:[%s2 + $0x3c] sm:$0xf]
    %v189 = vunpack.c.l.b16 %v181
    %v190 = vunpack.c.l.b16 %v182
    %v191 = vunpack.c.l.b16 %v183
    %v192 = vunpack.c.l.b16 %v184
    %v193 = vpack.c.b16 %v190, %v189
    %v194 = vpack.c.b16 %v192, %v191
    %v198 = vsel %vm86, %v180, 0
    %200 = vmatprep.subr.bf16.mxu0 0
    %201 = vmatpush1.bf16.msra.mxu0 0
    %202 = vmatprep.subr.bf16.mxu0 0
    %203 = vmatpush1.bf16.msra.mxu0 0
    %204 = vmatprep.subr.bf16.mxu0 0
    %205 = vmatpush1.bf16.msra.mxu0 0
    %206 = vmatprep.subr.bf16.mxu0 0
    %207 = vmatpush1.bf16.msra.mxu0 0
    %208 = vmatprep.subr.bf16.mxu0 0
    %209 = vmatpush1.bf16.msra.mxu0 0
    %210 = vmatprep.subr.bf16.mxu0 0
    %211 = vmatpush1.bf16.msra.mxu0 0
    %212 = vmatprep.subr.bf16.mxu0 0
    %213 = vmatpush1.bf16.msra.mxu0 %v194
    %214 = vmatprep.subr.bf16.mxu0 0
    %215 = vmatpush1.bf16.msra.mxu0 %v193
    %216 = vmatprep.subr.bf16.mxu0 0
    %217 = vmatpush2.bf16.msra.mxu0 0
    %218 = vmatprep.subr.bf16.mxu0 0
    %219 = vmatpush2.bf16.msra.mxu0 0
    %220 = vmatprep.subr.bf16.mxu0 0
    %221 = vmatpush2.bf16.msra.mxu0 0
    %222 = vmatprep.subr.bf16.mxu0 0
    %223 = vmatpush2.bf16.msra.mxu0 0
    %224 = vmatprep.subr.bf16.mxu0 0
    %225 = vmatpush2.bf16.msra.mxu0 0
    %226 = vmatprep.subr.bf16.mxu0 0
    %227 = vmatpush2.bf16.msra.mxu0 0
    %228 = vmatprep.subr.bf16.mxu0 0
    %229 = vmatpush2.bf16.msra.mxu0 0
    %230 = vmatprep.subr.bf16.mxu0 0
    %231 = vmatpush2.bf16.msra.mxu0 0
    %232 = vmatprep.mubr.bf16.mxu0 0
    %233 = vmatmul.mubr.bf16.gmra.mxu0 %v198
    %v234 = vpop.f32.mrf.mxu0
    %v235 = vadd.f32 %v38, %v234
    %v236 = vpop.f32.mrf.mxu0
    %v237 = vpop.f32.mrf.mxu0
    %v238 = vadd.f32 %v38, %v237
    %v239 = vpop.f32.mrf.mxu0
    %240 = vdwg.mxu0
    %249 = vrot.lane.b32.xlu0 %v43, 32
    %v250 = vpop.permute.xlu0 %249
    %251 = vrot.lane.b32.xlu0 %v44, 32
    %v252 = vpop.permute.xlu0 %251
    %253 = vrot.lane.b32.xlu0 %v45, 32
    %v254 = vpop.permute.xlu0 %253
    %255 = vrot.lane.b32.xlu0 %v46, 32
    %v256 = vpop.permute.xlu0 %255
    %257 = vrot.lane.b32.xlu0 %v47, 32
    %v258 = vpop.permute.xlu0 %257
    %259 = vrot.lane.b32.xlu0 %v48, 32
    %v260 = vpop.permute.xlu0 %259
    %261 = vrot.lane.b32.xlu0 %v49, 32
    %v262 = vpop.permute.xlu0 %261
    %263 = vrot.lane.b32.xlu0 %v50, 32
    %v264 = vpop.permute.xlu0 %263
    %v273 = vmul.f32 %v235, %v250
    %v274 = vmul.f32 %v238, %v252
    %v275 = vmul.f32 %v235, %v254
    %v276 = vmul.f32 %v238, %v256
    %v277 = vmul.f32 %v235, %v258
    %v278 = vmul.f32 %v238, %v260
    %v279 = vmul.f32 %v235, %v262
    %v280 = vmul.f32 %v238, %v264
    %v281 = vpack.c.bf16 %v274, %v273
    %v282 = vpack.c.bf16 %v276, %v275
    %v283 = vpack.c.bf16 %v278, %v277
    %v284 = vpack.c.bf16 %v280, %v279
    %285 = vrot.lane.b32.xlu0 %v43, 64
    %v286 = vpop.permute.xlu0 %285
    %287 = vrot.lane.b32.xlu0 %v44, 64
    %v288 = vpop.permute.xlu0 %287
    %289 = vrot.lane.b32.xlu0 %v45, 64
    %v290 = vpop.permute.xlu0 %289
    %291 = vrot.lane.b32.xlu0 %v46, 64
    %v292 = vpop.permute.xlu0 %291
    %293 = vrot.lane.b32.xlu0 %v47, 64
    %v294 = vpop.permute.xlu0 %293
    %295 = vrot.lane.b32.xlu0 %v48, 64
    %v296 = vpop.permute.xlu0 %295
    %297 = vrot.lane.b32.xlu0 %v49, 64
    %v298 = vpop.permute.xlu0 %297
    %299 = vrot.lane.b32.xlu0 %v50, 64
    %v300 = vpop.permute.xlu0 %299
    %v309 = vmul.f32 %v235, %v286
    %v310 = vmul.f32 %v238, %v288
    %v311 = vmul.f32 %v235, %v290
    %v312 = vmul.f32 %v238, %v292
    %v313 = vmul.f32 %v235, %v294
    %v314 = vmul.f32 %v238, %v296
    %v315 = vmul.f32 %v235, %v298
    %v316 = vmul.f32 %v238, %v300
    %v317 = vpack.c.bf16 %v310, %v309
    %v318 = vpack.c.bf16 %v312, %v311
    %v319 = vpack.c.bf16 %v314, %v313
    %v320 = vpack.c.bf16 %v316, %v315
    %v321 = vpack.c.bf16 %v238, %v235
    %326 = vrot.lane.b32.xlu0 %v281, 96
    %v327 = vpop.permute.xlu0 %326
    %328 = vrot.lane.b32.xlu0 %v282, 96
    %v329 = vpop.permute.xlu0 %328
    %330 = vrot.lane.b32.xlu0 %v283, 96
    %v331 = vpop.permute.xlu0 %330
    %332 = vrot.lane.b32.xlu0 %v284, 96
    %v333 = vpop.permute.xlu0 %332
    %v335 = vsel %vm86, %v321, 0
    %v338 = vsel %vm86, %v327, 0
    %v341 = vsel %vm86, %v329, 0
    %v344 = vsel %vm86, %v331, 0
    %v347 = vsel %vm86, %v333, 0
    %349 = vmatprep.subr.bf16.mxu0 0
    %350 = vmatpush1.bf16.xpose.msra.mxu0 0
    %351 = vmatprep.subr.bf16.mxu0 0
    %352 = vmatpush1.bf16.xpose.msra.mxu0 0
    %353 = vmatprep.subr.bf16.mxu0 0
    %354 = vmatpush1.bf16.xpose.msra.mxu0 0
    %355 = vmatprep.subr.bf16.mxu0 0
    %356 = vmatpush1.bf16.xpose.msra.mxu0 0
    %357 = vmatprep.subr.bf16.mxu0 0
    %358 = vmatpush1.bf16.xpose.msra.mxu0 %v347
    %359 = vmatprep.subr.bf16.mxu0 0
    %360 = vmatpush1.bf16.xpose.msra.mxu0 %v344
    %361 = vmatprep.subr.bf16.mxu0 0
    %362 = vmatpush1.bf16.xpose.msra.mxu0 %v341
    %363 = vmatprep.subr.bf16.mxu0 0
    %364 = vmatpush1.bf16.xpose.msra.mxu0 %v338
    %365 = vmatprep.subr.bf16.mxu0 0
    %366 = vmatpush2.bf16.xpose.msra.mxu0 0
    %367 = vmatprep.subr.bf16.mxu0 0
    %368 = vmatpush2.bf16.xpose.msra.mxu0 0
    %369 = vmatprep.subr.bf16.mxu0 0
    %370 = vmatpush2.bf16.xpose.msra.mxu0 0
    %371 = vmatprep.subr.bf16.mxu0 0
    %372 = vmatpush2.bf16.xpose.msra.mxu0 0
    %373 = vmatprep.subr.bf16.mxu0 0
    %374 = vmatpush2.bf16.xpose.msra.mxu0 0
    %375 = vmatprep.subr.bf16.mxu0 0
    %376 = vmatpush2.bf16.xpose.msra.mxu0 0
    %377 = vmatprep.subr.bf16.mxu0 0
    %378 = vmatpush2.bf16.xpose.msra.mxu0 0
    %379 = vmatprep.subr.bf16.mxu0 0
    %380 = vmatpush2.bf16.xpose.msra.mxu0 0
    %381 = vmatprep.mubr.bf16.mxu0 0
    %382 = vmatmul.mubr.bf16.gmra.mxu0 %v335
    %v383 = vpop.f32.mrf.mxu0
    %v384 = vadd.f32 %v51, %v383
    %v385 = vpop.f32.mrf.mxu0
    %v386 = vpop.f32.mrf.mxu0
    %v387 = vadd.f32 %v52, %v386
    %v388 = vpop.f32.mrf.mxu0
    %389 = vdwg.mxu0
    %v390 = vlaneseq
    %v391 = vshrl.u32 %v390, 7
    %v392 = vsub.s32 0, %v391
    %v393 = vrot.slane %v152, %v392
    %v394 = vadd.f32 %v384, %v393
    %v395 = vadd.f32 %v387, %v393
    %vm396 = vcmask 523264
    %v397 = vsel %vm396, %v394, -inf
    %398 = vmax.xlane.f32.xlu0 %v397
    %v399 = vpop.xlane.xlu0 %398
    %v400 = vsel %vm396, %v395, -inf
    %401 = vmax.xlane.f32.xlu0 %v400
    %v402 = vpop.xlane.xlu0 %401
    %v403 = vsub.f32 %v394, %v399
    %v404 = vsub.f32 %v395, %v402
    %v405 = vmul.f32 %v403, 1.442695
    %v406 = vpow.pop %v405
    %v407 = vmul.f32 %v404, 1.442695
    %v408 = vpow.pop %v407
    %v409 = vpack.c.bf16 %v408, %v406
    %v410 = vpack.c.bf16 %v44, %v43
    %v411 = vpack.c.bf16 %v46, %v45
    %v412 = vpack.c.bf16 %v48, %v47
    %v413 = vpack.c.bf16 %v50, %v49
    %v415 = vsel %vm396, %v409, 0
    %417 = vmatprep.subr.bf16.mxu0 0
    %418 = vmatpush1.bf16.msra.mxu0 0
    %419 = vmatprep.subr.bf16.mxu0 0
    %420 = vmatpush1.bf16.msra.mxu0 0
    %421 = vmatprep.subr.bf16.mxu0 0
    %422 = vmatpush1.bf16.msra.mxu0 0
    %423 = vmatprep.subr.bf16.mxu0 0
    %424 = vmatpush1.bf16.msra.mxu0 0
    %425 = vmatprep.subr.bf16.mxu0 0
    %426 = vmatpush1.bf16.msra.mxu0 %v413
    %427 = vmatprep.subr.bf16.mxu0 0
    %428 = vmatpush1.bf16.msra.mxu0 %v412
    %429 = vmatprep.subr.bf16.mxu0 0
    %430 = vmatpush1.bf16.msra.mxu0 %v411
    %431 = vmatprep.subr.bf16.mxu0 0
    %432 = vmatpush1.bf16.msra.mxu0 %v410
    %433 = vmatprep.subr.bf16.mxu0 0
    %434 = vmatpush2.bf16.msra.mxu0 0
    %435 = vmatprep.subr.bf16.mxu0 0
    %436 = vmatpush2.bf16.msra.mxu0 0
    %437 = vmatprep.subr.bf16.mxu0 0
    %438 = vmatpush2.bf16.msra.mxu0 0
    %439 = vmatprep.subr.bf16.mxu0 0
    %440 = vmatpush2.bf16.msra.mxu0 0
    %441 = vmatprep.subr.bf16.mxu0 0
    %442 = vmatpush2.bf16.msra.mxu0 0
    %443 = vmatprep.subr.bf16.mxu0 0
    %444 = vmatpush2.bf16.msra.mxu0 0
    %445 = vmatprep.subr.bf16.mxu0 0
    %446 = vmatpush2.bf16.msra.mxu0 0
    %447 = vmatprep.subr.bf16.mxu0 0
    %448 = vmatpush2.bf16.msra.mxu0 0
    %449 = vmatprep.mubr.bf16.mxu0 0
    %450 = vmatmul.mubr.bf16.gmra.mxu0 %v415
    %v451 = vpop.f32.mrf.mxu0
    %v452 = vadd.f32 0.0, %v451
    %v453 = vpop.f32.mrf.mxu0
    %v454 = vpop.f32.mrf.mxu0
    %v455 = vadd.f32 0.0, %v454
    %v456 = vpop.f32.mrf.mxu0
    %457 = vdwg.mxu0
    %462 = vrot.lane.b32.xlu0 %v317, 64
    %v463 = vpop.permute.xlu0 %462
    %464 = vrot.lane.b32.xlu0 %v318, 64
    %v465 = vpop.permute.xlu0 %464
    %466 = vrot.lane.b32.xlu0 %v319, 64
    %v467 = vpop.permute.xlu0 %466
    %468 = vrot.lane.b32.xlu0 %v320, 64
    %v469 = vpop.permute.xlu0 %468
    %474 = vmatprep.subr.bf16.mxu0 0
    %475 = vmatpush1.bf16.msra.mxu0 0
    %476 = vmatprep.subr.bf16.mxu0 0
    %477 = vmatpush1.bf16.msra.mxu0 0
    %478 = vmatprep.subr.bf16.mxu0 0
    %479 = vmatpush1.bf16.msra.mxu0 0
    %480 = vmatprep.subr.bf16.mxu0 0
    %481 = vmatpush1.bf16.msra.mxu0 0
    %482 = vmatprep.subr.bf16.mxu0 0
    %483 = vmatpush1.bf16.msra.mxu0 %v469
    %484 = vmatprep.subr.bf16.mxu0 0
    %485 = vmatpush1.bf16.msra.mxu0 %v467
    %486 = vmatprep.subr.bf16.mxu0 0
    %487 = vmatpush1.bf16.msra.mxu0 %v465
    %488 = vmatprep.subr.bf16.mxu0 0
    %489 = vmatpush1.bf16.msra.mxu0 %v463
    %490 = vmatprep.subr.bf16.mxu0 0
    %491 = vmatpush2.bf16.msra.mxu0 0
    %492 = vmatprep.subr.bf16.mxu0 0
    %493 = vmatpush2.bf16.msra.mxu0 0
    %494 = vmatprep.subr.bf16.mxu0 0
    %495 = vmatpush2.bf16.msra.mxu0 0
    %496 = vmatprep.subr.bf16.mxu0 0
    %497 = vmatpush2.bf16.msra.mxu0 0
    %498 = vmatprep.subr.bf16.mxu0 0
    %499 = vmatpush2.bf16.msra.mxu0 0
    %500 = vmatprep.subr.bf16.mxu0 0
    %501 = vmatpush2.bf16.msra.mxu0 0
    %502 = vmatprep.subr.bf16.mxu0 0
    %503 = vmatpush2.bf16.msra.mxu0 0
    %504 = vmatprep.subr.bf16.mxu0 0
    %505 = vmatpush2.bf16.msra.mxu0 0
    %506 = vmatprep.mubr.bf16.mxu0 0
    %507 = vmatmul.mubr.bf16.gmra.mxu0 %v415
    %v508 = vpop.f32.mrf.mxu0
    %v509 = vadd.f32 0.0, %v508
    %v510 = vpop.f32.mrf.mxu0
    %v511 = vpop.f32.mrf.mxu0
    %v512 = vadd.f32 0.0, %v511
    %v513 = vpop.f32.mrf.mxu0
    %514 = vdwg.mxu0
    %v515 = vmax.f32 %v452, 1e-20
    %v516 = vmax.f32 %v455, 1e-20
    %v517 = vrcp.pop %v515
    %v518 = vrcp.pop %v516
    %v519 = vmul.f32 %v509, %v517
    %v520 = vmul.f32 %v512, %v518
    %v521 = vld [vmem:[%s2 + $0x4] sm:$0xf]
    %v522 = vld [vmem:[%s2 + $0x18] sm:$0xf]
    %v523 = vld [vmem:[%s2 + $0x2c] sm:$0xf]
    %v524 = vld [vmem:[%s2 + $0x40] sm:$0xf]
    %v525 = vpack.c.bf16 %v520, %v519
    %v530 = vunpack.c.l.b16 %v521
    %v531 = vunpack.c.l.b16 %v522
    %v532 = vunpack.c.l.b16 %v523
    %v533 = vunpack.c.l.b16 %v524
    %v534 = vpack.c.b16 %v531, %v530
    %v535 = vpack.c.b16 %v533, %v532
    %v539 = vsel %vm86, %v525, 0
    %541 = vmatprep.subr.bf16.mxu0 0
    %542 = vmatpush1.bf16.msra.mxu0 0
    %543 = vmatprep.subr.bf16.mxu0 0
    %544 = vmatpush1.bf16.msra.mxu0 0
    %545 = vmatprep.subr.bf16.mxu0 0
    %546 = vmatpush1.bf16.msra.mxu0 0
    %547 = vmatprep.subr.bf16.mxu0 0
    %548 = vmatpush1.bf16.msra.mxu0 0
    %549 = vmatprep.subr.bf16.mxu0 0
    %550 = vmatpush1.bf16.msra.mxu0 0
    %551 = vmatprep.subr.bf16.mxu0 0
    %552 = vmatpush1.bf16.msra.mxu0 0
    %553 = vmatprep.subr.bf16.mxu0 0
    %554 = vmatpush1.bf16.msra.mxu0 %v535
    %555 = vmatprep.subr.bf16.mxu0 0
    %556 = vmatpush1.bf16.msra.mxu0 %v534
    %557 = vmatprep.subr.bf16.mxu0 0
    %558 = vmatpush2.bf16.msra.mxu0 0
    %559 = vmatprep.subr.bf16.mxu0 0
    %560 = vmatpush2.bf16.msra.mxu0 0
    %561 = vmatprep.subr.bf16.mxu0 0
    %562 = vmatpush2.bf16.msra.mxu0 0
    %563 = vmatprep.subr.bf16.mxu0 0
    %564 = vmatpush2.bf16.msra.mxu0 0
    %565 = vmatprep.subr.bf16.mxu0 0
    %566 = vmatpush2.bf16.msra.mxu0 0
    %567 = vmatprep.subr.bf16.mxu0 0
    %568 = vmatpush2.bf16.msra.mxu0 0
    %569 = vmatprep.subr.bf16.mxu0 0
    %570 = vmatpush2.bf16.msra.mxu0 0
    %571 = vmatprep.subr.bf16.mxu0 0
    %572 = vmatpush2.bf16.msra.mxu0 0
    %573 = vmatprep.mubr.bf16.mxu0 0
    %574 = vmatmul.mubr.bf16.gmra.mxu0 %v539
    %v575 = vpop.f32.mrf.mxu0
    %v576 = vadd.f32 0.0, %v575
    %v577 = vpop.f32.mrf.mxu0
    %v578 = vpop.f32.mrf.mxu0
    %v579 = vadd.f32 0.0, %v578
    %v580 = vpop.f32.mrf.mxu0
    %581 = vdwg.mxu0
    %v582 = vadd.f32 %v125, %v576
    %v583 = vadd.f32 %v128, %v579
    %v584 = vadd.f32 %v582, %v39
    %v585 = vadd.f32 %v583, %v39
    %v586 = vsel %vm86, %v584, 0.0
    %587 = vadd.xlane.f32.xlu0 %v586
    %v588 = vpop.xlane.xlu0 %587
    %v589 = vsel %vm86, %v585, 0.0
    %590 = vadd.xlane.f32.xlu0 %v589
    %v591 = vpop.xlane.xlu0 %590
    %v592 = vmul.f32 %v588, %v159
    %v593 = vmul.f32 %v591, %v159
    %v594 = vsub.f32 %v584, %v592
    %v595 = vsub.f32 %v585, %v593
    %v596 = vmul.f32 %v594, %v594
    %v597 = vmul.f32 %v595, %v595
    %v598 = vsel %vm86, %v596, 0.0
    %599 = vadd.xlane.f32.xlu0 %v598
    %v600 = vpop.xlane.xlu0 %599
    %v601 = vsel %vm86, %v597, 0.0
    %602 = vadd.xlane.f32.xlu0 %v601
    %v603 = vpop.xlane.xlu0 %602
    %v604 = vmul.f32 %v600, %v159
    %v605 = vmul.f32 %v603, %v159
    %v606 = vadd.f32 %v604, 1e-05
    %v607 = vadd.f32 %v605, 1e-05
    %v608 = vrsqrt.pop %v606
    %v609 = vrsqrt.pop %v607
    %v610 = vmul.f32 %v594, %v608
    %v611 = vmul.f32 %v595, %v609
    %v612 = vpack.c.bf16 %v611, %v610
    %v613 = vld [vmem:[%s2 + $0x8] sm:$0xff]
    %v614 = vld [vmem:[%s2 + $0x1c] sm:$0xff]
    %v615 = vld [vmem:[%s2 + $0x30] sm:$0xff]
    %v616 = vld [vmem:[%s2 + $0x44] sm:$0xff]
    %v618 = vlaneseq
    %v619 = vshrl.u32 %v618, 7
    %v620 = vsub.s32 0, %v619
    %v621 = vrot.slane %v41, %v620
    %v622 = vlaneseq
    %v623 = vshrl.u32 %v622, 7
    %v624 = vsub.s32 1, %v623
    %v625 = vrot.slane %v41, %v624
    %v632 = vunpack.c.l.b16 %v613
    %v633 = vunpack.c.h.b16 %v613
    %v634 = vunpack.c.l.b16 %v614
    %v635 = vunpack.c.h.b16 %v614
    %v636 = vunpack.c.l.b16 %v615
    %v637 = vunpack.c.h.b16 %v615
    %v638 = vunpack.c.l.b16 %v616
    %v639 = vunpack.c.h.b16 %v616
    %v640 = vpack.c.b16 %v634, %v632
    %v641 = vpack.c.b16 %v635, %v633
    %v642 = vpack.c.b16 %v638, %v636
    %v643 = vpack.c.b16 %v639, %v637
    %v649 = vsel %vm86, %v612, 0
    %651 = vmatprep.subr.bf16.mxu0 0
    %652 = vmatpush1.bf16.msra.mxu0 0
    %653 = vmatprep.subr.bf16.mxu0 0
    %654 = vmatpush1.bf16.msra.mxu0 0
    %655 = vmatprep.subr.bf16.mxu0 0
    %656 = vmatpush1.bf16.msra.mxu0 0
    %657 = vmatprep.subr.bf16.mxu0 0
    %658 = vmatpush1.bf16.msra.mxu0 0
    %659 = vmatprep.subr.bf16.mxu0 0
    %660 = vmatpush1.bf16.msra.mxu0 0
    %661 = vmatprep.subr.bf16.mxu0 0
    %662 = vmatpush1.bf16.msra.mxu0 0
    %663 = vmatprep.subr.bf16.mxu0 %v643
    %664 = vmatpush1.bf16.msra.mxu0 %v642
    %665 = vmatprep.subr.bf16.mxu0 %v641
    %666 = vmatpush1.bf16.msra.mxu0 %v640
    %667 = vmatprep.subr.bf16.mxu0 0
    %668 = vmatpush2.bf16.msra.mxu0 0
    %669 = vmatprep.subr.bf16.mxu0 0
    %670 = vmatpush2.bf16.msra.mxu0 0
    %671 = vmatprep.subr.bf16.mxu0 0
    %672 = vmatpush2.bf16.msra.mxu0 0
    %673 = vmatprep.subr.bf16.mxu0 0
    %674 = vmatpush2.bf16.msra.mxu0 0
    %675 = vmatprep.subr.bf16.mxu0 0
    %676 = vmatpush2.bf16.msra.mxu0 0
    %677 = vmatprep.subr.bf16.mxu0 0
    %678 = vmatpush2.bf16.msra.mxu0 0
    %679 = vmatprep.subr.bf16.mxu0 0
    %680 = vmatpush2.bf16.msra.mxu0 0
    %681 = vmatprep.subr.bf16.mxu0 0
    %682 = vmatpush2.bf16.msra.mxu0 0
    %683 = vmatprep.mubr.bf16.mxu0 0
    %684 = vmatmul.mubr.bf16.gmra.mxu0 %v649
    %v685 = vpop.f32.mrf.mxu0
    %v686 = vadd.f32 %v621, %v685
    %v687 = vpop.f32.mrf.mxu0
    %v688 = vadd.f32 %v625, %v687
    %v689 = vpop.f32.mrf.mxu0
    %v690 = vadd.f32 %v621, %v689
    %v691 = vpop.f32.mrf.mxu0
    %v692 = vadd.f32 %v625, %v691
    %693 = vdwg.mxu0
    %v694 = vmul.f32 %v688, %v688
    %v695 = vmul.f32 %v692, %v692
    %v696 = vmul.f32 %v688, %v694
    %v697 = vmul.f32 %v692, %v695
    %v698 = vmul.f32 %v696, 0.044715
    %v699 = vmul.f32 %v697, 0.044715
    %v700 = vadd.f32 %v688, %v698
    %v701 = vadd.f32 %v692, %v699
    %v702 = vmul.f32 %v700, 0.7978846
    %v703 = vmul.f32 %v701, 0.7978846
    %v704 = vtanh.pop %v702
    %v705 = vtanh.pop %v703
    %v706 = vadd.f32 %v704, 1.0
    %v707 = vadd.f32 %v705, 1.0
    %v708 = vmul.f32 %v706, 0.5
    %v709 = vmul.f32 %v707, 0.5
    %v710 = vmul.f32 %v688, %v708
    %v711 = vmul.f32 %v692, %v709
    %v712 = vmul.f32 %v686, %v710
    %v713 = vmul.f32 %v690, %v711
    %v714 = vpack.c.bf16 %v713, %v712
    %v715 = vld [vmem:[%s3] sm:$0xf]
    %v716 = vld [vmem:[%s3 + $0x4] sm:$0xf]
    %v717 = vld [vmem:[%s3 + $0x8] sm:$0xf]
    %v718 = vld [vmem:[%s3 + $0xc] sm:$0xf]
    %v719 = vld [vmem:[%s3 + $0x10] sm:$0xf]
    %v720 = vld [vmem:[%s3 + $0x14] sm:$0xf]
    %v721 = vld [vmem:[%s3 + $0x18] sm:$0xf]
    %v722 = vld [vmem:[%s3 + $0x1c] sm:$0xf]
    %v723 = vld [vmem:[%s3 + $0x20] sm:$0xf]
    %v724 = vld [vmem:[%s3 + $0x24] sm:$0xf]
    %v725 = vld [vmem:[%s3 + $0x28] sm:$0xf]
    %v726 = vld [vmem:[%s3 + $0x2c] sm:$0xf]
    %v727 = vld [vmem:[%s3 + $0x30] sm:$0xf]
    %v728 = vld [vmem:[%s3 + $0x34] sm:$0xf]
    %v729 = vld [vmem:[%s3 + $0x38] sm:$0xf]
    %v730 = vld [vmem:[%s3 + $0x3c] sm:$0xf]
    %v747 = vunpack.c.l.b16 %v715
    %v748 = vunpack.c.l.b16 %v716
    %v749 = vunpack.c.l.b16 %v717
    %v750 = vunpack.c.l.b16 %v718
    %v751 = vunpack.c.l.b16 %v719
    %v752 = vunpack.c.l.b16 %v720
    %v753 = vunpack.c.l.b16 %v721
    %v754 = vunpack.c.l.b16 %v722
    %v755 = vunpack.c.l.b16 %v723
    %v756 = vunpack.c.l.b16 %v724
    %v757 = vunpack.c.l.b16 %v725
    %v758 = vunpack.c.l.b16 %v726
    %v759 = vunpack.c.l.b16 %v727
    %v760 = vunpack.c.l.b16 %v728
    %v761 = vunpack.c.l.b16 %v729
    %v762 = vunpack.c.l.b16 %v730
    %v763 = vpack.c.b16 %v748, %v747
    %v764 = vpack.c.b16 %v750, %v749
    %v765 = vpack.c.b16 %v752, %v751
    %v766 = vpack.c.b16 %v754, %v753
    %v767 = vpack.c.b16 %v756, %v755
    %v768 = vpack.c.b16 %v758, %v757
    %v769 = vpack.c.b16 %v760, %v759
    %v770 = vpack.c.b16 %v762, %v761
    %779 = vmatprep.subr.bf16.mxu0 0
    %780 = vmatpush1.bf16.msra.mxu0 %v770
    %781 = vmatprep.subr.bf16.mxu0 0
    %782 = vmatpush1.bf16.msra.mxu0 %v769
    %783 = vmatprep.subr.bf16.mxu0 0
    %784 = vmatpush1.bf16.msra.mxu0 %v768
    %785 = vmatprep.subr.bf16.mxu0 0
    %786 = vmatpush1.bf16.msra.mxu0 %v767
    %787 = vmatprep.subr.bf16.mxu0 0
    %788 = vmatpush1.bf16.msra.mxu0 %v766
    %789 = vmatprep.subr.bf16.mxu0 0
    %790 = vmatpush1.bf16.msra.mxu0 %v765
    %791 = vmatprep.subr.bf16.mxu0 0
    %792 = vmatpush1.bf16.msra.mxu0 %v764
    %793 = vmatprep.subr.bf16.mxu0 0
    %794 = vmatpush1.bf16.msra.mxu0 %v763
    %795 = vmatprep.subr.bf16.mxu0 0
    %796 = vmatpush2.bf16.msra.mxu0 0
    %797 = vmatprep.subr.bf16.mxu0 0
    %798 = vmatpush2.bf16.msra.mxu0 0
    %799 = vmatprep.subr.bf16.mxu0 0
    %800 = vmatpush2.bf16.msra.mxu0 0
    %801 = vmatprep.subr.bf16.mxu0 0
    %802 = vmatpush2.bf16.msra.mxu0 0
    %803 = vmatprep.subr.bf16.mxu0 0
    %804 = vmatpush2.bf16.msra.mxu0 0
    %805 = vmatprep.subr.bf16.mxu0 0
    %806 = vmatpush2.bf16.msra.mxu0 0
    %807 = vmatprep.subr.bf16.mxu0 0
    %808 = vmatpush2.bf16.msra.mxu0 0
    %809 = vmatprep.subr.bf16.mxu0 0
    %810 = vmatpush2.bf16.msra.mxu0 0
    %811 = vmatprep.mubr.bf16.mxu0 0
    %812 = vmatmul.mubr.bf16.gmra.mxu0 %v714
    %v813 = vpop.f32.mrf.mxu0
    %v814 = vadd.f32 0.0, %v813
    %v815 = vpop.f32.mrf.mxu0
    %v816 = vpop.f32.mrf.mxu0
    %v817 = vadd.f32 0.0, %v816
    %v818 = vpop.f32.mrf.mxu0
    %819 = vdwg.mxu0
    %v820 = vadd.f32 %v584, %v814
    %v821 = vadd.f32 %v585, %v817
    %v822 = vadd.f32 %v820, %v42
    %v823 = vadd.f32 %v821, %v42
    %824 = vst.msk [vmem:[#allocation5] sm:$0xff] %vm86, %v822
    %825 = vst.msk [vmem:[#allocation5 + $0x8] sm:$0xff] %vm86, %v823
    // Predicated region
    $region26: #{tpu_custom_call.1} parent=1 // pred_check
      _
    $region27: #{tpu_custom_call.1} parent=1 // pred_check_branch
      %827 = sbr.rel (0) target = $region29
    $region28: #{tpu_custom_call.1} parent=1 // pred_region
      %s829 = ssub.s32 256, 256
      %830 = vsyncadd [#allocation4], %s829
      %s831 = sshll.u32 [#allocation5], 4
      %s832 = int_to_ptr.vmem [resolvable:$true] %s831
      %837 = dma.vmem_to_hbm [thread:$0]  %s832, 256, %s5, [#allocation4], 128, 128, 8
    $region29: #{tpu_custom_call.1} parent=1 // pred_fallthru
      _
    // Predicated region
    $region30: #{tpu_custom_call.1} parent=1 // pred_check
      _
    $region31: #{tpu_custom_call.1} parent=1 // pred_check_branch
      %839 = sbr.rel (0) target = $region33
    $region32: #{tpu_custom_call.1} parent=1 // pred_region
      %840 = dma.done [#allocation4], 256
    $region33: #{tpu_custom_call.1} parent=1 // pred_fallthru
      _
    %841 = vsyncpa [#allocation3], 1
    %842 = vsyncpa [#allocation4], 1

</llo_original>
